<compile_context>
chip_gen: v5e
topology: v5e:2x2
jax: 0.10.0
libtpu: 0.0.40
codegen_flags: <defaults>
</compile_context>

<pallas_src>
import functools
import math

import jax
import jax.numpy as jnp
from jax import lax
from jax.experimental import pallas as pl
from jax.experimental.pallas import tpu as pltpu

# SNNParameters defaults, fixed deterministically in-script (synthetic):
VTH = 0.5   # sp.vth_init
TAU = 0.2   # sp.tau_mem

LANE = 128
# Beyond this T the lane scan's ~6*(T-1) VALU ops/element exceed the HBM
# roofline budget on v6e/v7x; switch to the O(1)-work time-major scan.
LANE_SCAN_MAX_T = 16


def _round_up(a, b):
    return ((a + b - 1) // b) * b


# ---------------------------------------------------------------------------
# Fast path (T <= 16): no HBM layout changes, masked lane-roll scan.
# ---------------------------------------------------------------------------
def _lif_lanescan_kernel(x_ref, o_ref, *, steps, chunk):
    """x_ref / o_ref: (tm, 128) tiles of the flat (pixels*T) element stream.

    Lane l holds time step (l % steps) of some pixel; because 128 % steps == 0
    every pixel's `steps` samples are contiguous within one 128-lane row, so
    u_{t-1} lives exactly one lane to the left of u_t.  The recurrence is a
    masked lane-roll scan; blocks carry no state and are fully parallel.
    """
    n_chunks = x_ref.shape[0] // chunk
    # Hoisted: computed once per grid block, loop-invariant for every chunk.
    t_lane = lax.broadcasted_iota(jnp.int32, (chunk, LANE), 1) % steps

    def chunk_body(c, carry):
        r0 = pl.multiple_of(c * chunk, chunk)
        x = x_ref[pl.ds(r0, chunk), :].astype(jnp.float32)     # (chunk, 128)
        u = x                              # t == 0 lanes: u0 = x0 (u_prev = 0)
        for s in range(1, steps):          # short static unroll (steps <= 16)
            prev = pltpu.roll(u, shift=1, axis=1)               # u_{s-1}
            # spike -> reset to 0 before leak; fold: u = x + tau*keep(prev)
            u = jnp.where(t_lane == s,
                          x + TAU * jnp.where(prev > VTH, 0.0, prev),
                          u)
        o_ref[pl.ds(r0, chunk), :] = (u > VTH).astype(o_ref.dtype)
        return carry

    lax.fori_loop(0, n_chunks, chunk_body, 0)


def _row_tiling(n_rows):
    """Pick (rows_per_block tm, rows_per_chunk).  chunk <= 64 to avoid spills;
    >= 2 grid blocks whenever n_rows >= 16 (v7x megacore)."""
    if n_rows < 16:
        return n_rows, n_rows                      # single full-dim block
    if n_rows < 128:
        tm = _round_up(pl.cdiv(n_rows, 2), 8)      # 2 blocks, chunk == tm <= 64
        return tm, tm
    # Large: big blocks for DMA efficiency, 64-row chunks to bound vreg lives.
    tm = min(2048, _round_up(pl.cdiv(n_rows, 2), 64))
    return tm, 64


def _lif_forward_lanescan(x, steps_run, out_dtype):
    """Run the lane-scan for `steps_run` (a divisor of 128, >= T) time steps.
    Inputs beyond T are zero-padded; the recurrence is causal so the first T
    outputs are unchanged and the padded tail is sliced off."""
    orig_shape = x.shape
    steps = orig_shape[-1]
    if steps_run != steps:
        x = jnp.pad(x, [(0, 0)] * (x.ndim - 1) + [(0, steps_run - steps)])
    run_shape = x.shape

    n = math.prod(run_shape)                       # pixels * steps_run
    n_rows = pl.cdiv(n, LANE)

    flat = x.reshape(n)                            # free view: T is minor-most
    lane_pad = n_rows * LANE - n
    if lane_pad:                                   # rare: pixels*T % 128 != 0
        flat = jnp.pad(flat, (0, lane_pad))
    xk = flat.reshape(n_rows, LANE)

    tm, chunk = _row_tiling(n_rows)

    out = pl.pallas_call(
        functools.partial(_lif_lanescan_kernel, steps=steps_run, chunk=chunk),
        out_shape=jax.ShapeDtypeStruct((n_rows, LANE), out_dtype),
        grid=(pl.cdiv(n_rows, tm),),               # ragged last block is masked
        in_specs=[pl.BlockSpec((tm, LANE), lambda r: (r, 0))],
        out_specs=pl.BlockSpec((tm, LANE), lambda r: (r, 0)),
        compiler_params=pltpu.CompilerParams(
            dimension_semantics=("parallel",),
            vmem_limit_bytes=32 * 1024 * 1024),
    )(xk)

    out = out.reshape(n_rows * LANE)
    if lane_pad:
        out = out[:n]
    out = out.reshape(run_shape)
    if steps_run != steps:
        out = out[..., :steps]
    return out


# ---------------------------------------------------------------------------
# Time-major path (T > 16): O(1) work per element, u carried in VMEM scratch.
# ---------------------------------------------------------------------------
def _lif_timemajor_kernel(x_ref, o_ref, u_ref):
    t = pl.program_id(1)

    @pl.when(t == 0)
    def _():
        u_ref[...] = jnp.zeros_like(u_ref)

    x = x_ref[...].astype(jnp.float32)             # (tr, 128), lane-dense
    u_prev = u_ref[...]
    u = jnp.where(u_prev > VTH, x, u_prev * TAU + x)
    u_ref[...] = u
    o_ref[...] = (u > VTH).astype(o_ref.dtype)


def _lif_forward_timemajor(x, out_dtype):
    orig_shape = x.shape
    steps = orig_shape[-1]
    m = math.prod(orig_shape[:-1])
    r_rows = pl.cdiv(m, LANE)

    if r_rows <= 16:
        tr = r_rows                                # single full-dim block
    else:
        tr = min(2048, _round_up(pl.cdiv(r_rows, 2), 8))   # up to 1 MiB blocks
    grid_r = pl.cdiv(r_rows, tr)

    mp = r_rows * LANE
    # TODO(synk): the minor-dim transpose is a strided HBM pass each way;
    # fusing it into the kernel (memory_space=pl.ANY + in-VMEM transpose) would
    # remove it but is not implemented here.
    x2 = x.reshape(m, steps).T                     # (T, M)
    if mp != m:
        x2 = jnp.pad(x2, ((0, 0), (0, mp - m)))
    xk = x2.reshape(steps, r_rows, LANE)

    out = pl.pallas_call(
        _lif_timemajor_kernel,
        out_shape=jax.ShapeDtypeStruct((steps, r_rows, LANE), out_dtype),
        grid=(grid_r, steps),                      # time last = carried axis
        in_specs=[pl.BlockSpec((None, tr, LANE), lambda r, t: (t, r, 0))],
        out_specs=pl.BlockSpec((None, tr, LANE), lambda r, t: (t, r, 0)),
        scratch_shapes=[pltpu.VMEM((tr, LANE), jnp.float32)],   # membrane u
        compiler_params=pltpu.CompilerParams(
            dimension_semantics=("parallel", "arbitrary"),
            vmem_limit_bytes=32 * 1024 * 1024),
    )(xk)

    out = out.reshape(steps, mp)
    if mp != m:
        out = out[:, :m]
    return out.T.reshape(orig_shape)


# ---------------------------------------------------------------------------
def lif_forward(x, *, out_dtype=None):
    """LIF spiking over the trailing time axis of x (any leading shape).

    out_dtype is opt-in (e.g. jnp.int8 to cut spike writeback 4x); the default
    matches the PyTorch module (out dtype == x dtype).
    """
    steps = x.shape[-1]
    out_dtype = x.dtype if out_dtype is None else jnp.dtype(out_dtype)
    if steps <= LANE_SCAN_MAX_T:
        steps_run = int(pl.next_power_of_2(steps))     # smallest divisor of 128 >= T
        return _lif_forward_lanescan(x, steps_run, out_dtype)
    return _lif_forward_timemajor(x, out_dtype)


def lif_reference(x):
    """Pure-JAX reference mirroring the PyTorch loop."""
    steps = x.shape[-1]
    u = jnp.zeros(x.shape[:-1], jnp.float32)
    o = jnp.zeros(x.shape[:-1], jnp.float32)
    outs = []
    for t in range(steps):
        u = u * TAU * (1.0 - o) + x[..., t].astype(jnp.float32)
        o = (u > VTH).astype(jnp.float32)
        outs.append(o)
    return jnp.stack(outs, axis=-1).astype(x.dtype)


# TODO(synk): the non-SNN path (self.activation(x) when sp.snn_process is False)
# is an arbitrary user callable and is not implemented in the kernel.
# TODO(synk): forward-only; STBP training requires a custom_vjp surrogate
# gradient for the Heaviside spike.

if __name__ == "__main__":
    lif = jax.jit(lif_forward)

    # 1) Fast path: (B, C, H, W, T) with T=8 -> lane scan, no pads, grid of 2.
    x = jax.random.normal(jax.random.PRNGKey(0), (2, 4, 16, 16, 8), jnp.float32)
    y = jax.block_until_ready(lif(x))
    assert y.shape == x.shape and y.dtype == x.dtype
    assert jnp.allclose(y, lif_reference(x)), "fast-path mismatch vs reference"

    # 2) T=6 does not divide 128 -> time axis zero-padded to 8, same lane scan.
    x2 = jax.random.normal(jax.random.PRNGKey(1), (2, 4, 16, 16, 6), jnp.float32)
    y2 = jax.block_until_ready(lif(x2))
    assert y2.shape == x2.shape and y2.dtype == x2.dtype
    assert jnp.allclose(y2, lif_reference(x2)), "padded-T mismatch vs reference"

    # 3) Large T (> 16) -> time-major carried-state kernel.
    x3 = jax.random.normal(jax.random.PRNGKey(2), (2, 4, 8, 8, 20), jnp.float32)
    y3 = jax.block_until_ready(lif(x3))
    assert y3.shape == x3.shape and y3.dtype == x3.dtype
    assert jnp.allclose(y3, lif_reference(x3)), "time-major mismatch vs reference"

    # 4) Ragged last grid block (320 rows, 192-row blocks) -> masked edge block.
    x4 = jax.random.normal(jax.random.PRNGKey(3), (5, 4, 16, 16, 8), jnp.float32)
    y4 = jax.block_until_ready(lif(x4))
    assert y4.shape == x4.shape and y4.dtype == x4.dtype
    assert jnp.allclose(y4, lif_reference(x4)), "ragged-grid mismatch vs reference"

    print("KERNEL_OK")
</pallas_src>

<mosaic_0001>
module attributes {stable_mosaic.version = 11 : i64} {
  func.func @_lif_lanescan_kernel(%arg0: i32, %arg1: memref<64x128xf32, #tpu.memory_space<vmem>>, %arg2: memref<64x128xf32, #tpu.memory_space<vmem>>) attributes {dimension_semantics = [#tpu.dimension_semantics<parallel>], iteration_bounds = array<i64: 2>, scalar_prefetch = 0 : i64, scratch_operands = 0 : i64, tpu.core_type = #tpu.core_type<tc>, window_params = [{transform_indices = @transform_0, window_bounds = array<i64: 64, 128>}, {transform_indices = @transform_1, window_bounds = array<i64: 64, 128>}]} {
    %0 = tpu.iota {dimensions = array<i32: 1>} : vector<64x128xi32>
    %c8_i32 = arith.constant 8 : i32
    %c0_i32 = arith.constant 0 : i32
    %1 = arith.cmpi eq, %c8_i32, %c0_i32 : i32
    %c1_i32 = arith.constant 1 : i32
    %2 = arith.select %1, %c1_i32, %c8_i32 : i32
    %3 = vector.broadcast %2 : i32 to vector<64x128xi32>
    %4 = arith.remsi %0, %3 : vector<64x128xi32>
    %c0_i32_0 = arith.constant 0 : i32
    %5 = vector.broadcast %c0_i32_0 : i32 to vector<64x128xi32>
    %6 = arith.cmpi ne, %4, %5 : vector<64x128xi32>
    %c0_i32_1 = arith.constant 0 : i32
    %7 = vector.broadcast %c0_i32_1 : i32 to vector<64x128xi32>
    %8 = arith.cmpi slt, %4, %7 : vector<64x128xi32>
    %c0_i32_2 = arith.constant 0 : i32
    %9 = arith.cmpi slt, %2, %c0_i32_2 : i32
    %10 = vector.broadcast %9 : i1 to vector<64x128xi1>
    %11 = vector.broadcast %10 : vector<64x128xi1> to vector<64x128xi1>
    %12 = arith.xori %8, %11 : vector<64x128xi1>
    %13 = arith.andi %12, %6 : vector<64x128xi1>
    %14 = vector.broadcast %2 : i32 to vector<64x128xi32>
    %15 = arith.addi %4, %14 : vector<64x128xi32>
    %16 = arith.select %13, %15, %4 : vector<64x128xi1>, vector<64x128xi32>
    %c0_i32_3 = arith.constant 0 : i32
    %c64_i32 = arith.constant 64 : i32
    %17 = arith.muli %c0_i32_3, %c64_i32 : i32
    %18 = tpu.assume_multiple %17, 64 : i32
    %19 = arith.index_cast %18 : i32 to index
    %c0 = arith.constant 0 : index
    %20 = vector.load %arg1[%19, %c0] : memref<64x128xf32, #tpu.memory_space<vmem>>, vector<64x128xf32>
    %c1_i32_4 = arith.constant 1 : i32
    %21 = tpu.dynamic_rotate %20 by %c1_i32_4 dim 1 : vector<64x128xf32>, i32 -> vector<64x128xf32>
    %c1_i32_5 = arith.constant 1 : i32
    %22 = vector.broadcast %c1_i32_5 : i32 to vector<64x128xi32>
    %23 = arith.cmpi eq, %16, %22 : vector<64x128xi32>
    %cst = arith.constant 5.000000e-01 : f32
    %24 = vector.broadcast %cst : f32 to vector<64x128xf32>
    %25 = arith.cmpf ogt, %21, %24 : vector<64x128xf32>
    %cst_6 = arith.constant 0.000000e+00 : f32
    %26 = vector.broadcast %cst_6 : f32 to vector<64x128xf32>
    %27 = arith.select %25, %26, %21 : vector<64x128xi1>, vector<64x128xf32>
    %cst_7 = arith.constant 2.000000e-01 : f32
    %28 = vector.broadcast %cst_7 : f32 to vector<64x128xf32>
    %29 = arith.mulf %28, %27 : vector<64x128xf32>
    %30 = arith.addf %20, %29 : vector<64x128xf32>
    %31 = arith.select %23, %30, %20 : vector<64x128xi1>, vector<64x128xf32>
    %c1_i32_8 = arith.constant 1 : i32
    %32 = tpu.dynamic_rotate %31 by %c1_i32_8 dim 1 : vector<64x128xf32>, i32 -> vector<64x128xf32>
    %c2_i32 = arith.constant 2 : i32
    %33 = vector.broadcast %c2_i32 : i32 to vector<64x128xi32>
    %34 = arith.cmpi eq, %16, %33 : vector<64x128xi32>
    %cst_9 = arith.constant 5.000000e-01 : f32
    %35 = vector.broadcast %cst_9 : f32 to vector<64x128xf32>
    %36 = arith.cmpf ogt, %32, %35 : vector<64x128xf32>
    %cst_10 = arith.constant 0.000000e+00 : f32
    %37 = vector.broadcast %cst_10 : f32 to vector<64x128xf32>
    %38 = arith.select %36, %37, %32 : vector<64x128xi1>, vector<64x128xf32>
    %cst_11 = arith.constant 2.000000e-01 : f32
    %39 = vector.broadcast %cst_11 : f32 to vector<64x128xf32>
    %40 = arith.mulf %39, %38 : vector<64x128xf32>
    %41 = arith.addf %20, %40 : vector<64x128xf32>
    %42 = arith.select %34, %41, %31 : vector<64x128xi1>, vector<64x128xf32>
    %c1_i32_12 = arith.constant 1 : i32
    %43 = tpu.dynamic_rotate %42 by %c1_i32_12 dim 1 : vector<64x128xf32>, i32 -> vector<64x128xf32>
    %c3_i32 = arith.constant 3 : i32
    %44 = vector.broadcast %c3_i32 : i32 to vector<64x128xi32>
    %45 = arith.cmpi eq, %16, %44 : vector<64x128xi32>
    %cst_13 = arith.constant 5.000000e-01 : f32
    %46 = vector.broadcast %cst_13 : f32 to vector<64x128xf32>
    %47 = arith.cmpf ogt, %43, %46 : vector<64x128xf32>
    %cst_14 = arith.constant 0.000000e+00 : f32
    %48 = vector.broadcast %cst_14 : f32 to vector<64x128xf32>
    %49 = arith.select %47, %48, %43 : vector<64x128xi1>, vector<64x128xf32>
    %cst_15 = arith.constant 2.000000e-01 : f32
    %50 = vector.broadcast %cst_15 : f32 to vector<64x128xf32>
    %51 = arith.mulf %50, %49 : vector<64x128xf32>
    %52 = arith.addf %20, %51 : vector<64x128xf32>
    %53 = arith.select %45, %52, %42 : vector<64x128xi1>, vector<64x128xf32>
    %c1_i32_16 = arith.constant 1 : i32
    %54 = tpu.dynamic_rotate %53 by %c1_i32_16 dim 1 : vector<64x128xf32>, i32 -> vector<64x128xf32>
    %c4_i32 = arith.constant 4 : i32
    %55 = vector.broadcast %c4_i32 : i32 to vector<64x128xi32>
    %56 = arith.cmpi eq, %16, %55 : vector<64x128xi32>
    %cst_17 = arith.constant 5.000000e-01 : f32
    %57 = vector.broadcast %cst_17 : f32 to vector<64x128xf32>
    %58 = arith.cmpf ogt, %54, %57 : vector<64x128xf32>
    %cst_18 = arith.constant 0.000000e+00 : f32
    %59 = vector.broadcast %cst_18 : f32 to vector<64x128xf32>
    %60 = arith.select %58, %59, %54 : vector<64x128xi1>, vector<64x128xf32>
    %cst_19 = arith.constant 2.000000e-01 : f32
    %61 = vector.broadcast %cst_19 : f32 to vector<64x128xf32>
    %62 = arith.mulf %61, %60 : vector<64x128xf32>
    %63 = arith.addf %20, %62 : vector<64x128xf32>
    %64 = arith.select %56, %63, %53 : vector<64x128xi1>, vector<64x128xf32>
    %c1_i32_20 = arith.constant 1 : i32
    %65 = tpu.dynamic_rotate %64 by %c1_i32_20 dim 1 : vector<64x128xf32>, i32 -> vector<64x128xf32>
    %c5_i32 = arith.constant 5 : i32
    %66 = vector.broadcast %c5_i32 : i32 to vector<64x128xi32>
    %67 = arith.cmpi eq, %16, %66 : vector<64x128xi32>
    %cst_21 = arith.constant 5.000000e-01 : f32
    %68 = vector.broadcast %cst_21 : f32 to vector<64x128xf32>
    %69 = arith.cmpf ogt, %65, %68 : vector<64x128xf32>
    %cst_22 = arith.constant 0.000000e+00 : f32
    %70 = vector.broadcast %cst_22 : f32 to vector<64x128xf32>
    %71 = arith.select %69, %70, %65 : vector<64x128xi1>, vector<64x128xf32>
    %cst_23 = arith.constant 2.000000e-01 : f32
    %72 = vector.broadcast %cst_23 : f32 to vector<64x128xf32>
    %73 = arith.mulf %72, %71 : vector<64x128xf32>
    %74 = arith.addf %20, %73 : vector<64x128xf32>
    %75 = arith.select %67, %74, %64 : vector<64x128xi1>, vector<64x128xf32>
    %c1_i32_24 = arith.constant 1 : i32
    %76 = tpu.dynamic_rotate %75 by %c1_i32_24 dim 1 : vector<64x128xf32>, i32 -> vector<64x128xf32>
    %c6_i32 = arith.constant 6 : i32
    %77 = vector.broadcast %c6_i32 : i32 to vector<64x128xi32>
    %78 = arith.cmpi eq, %16, %77 : vector<64x128xi32>
    %cst_25 = arith.constant 5.000000e-01 : f32
    %79 = vector.broadcast %cst_25 : f32 to vector<64x128xf32>
    %80 = arith.cmpf ogt, %76, %79 : vector<64x128xf32>
    %cst_26 = arith.constant 0.000000e+00 : f32
    %81 = vector.broadcast %cst_26 : f32 to vector<64x128xf32>
    %82 = arith.select %80, %81, %76 : vector<64x128xi1>, vector<64x128xf32>
    %cst_27 = arith.constant 2.000000e-01 : f32
    %83 = vector.broadcast %cst_27 : f32 to vector<64x128xf32>
    %84 = arith.mulf %83, %82 : vector<64x128xf32>
    %85 = arith.addf %20, %84 : vector<64x128xf32>
    %86 = arith.select %78, %85, %75 : vector<64x128xi1>, vector<64x128xf32>
    %c1_i32_28 = arith.constant 1 : i32
    %87 = tpu.dynamic_rotate %86 by %c1_i32_28 dim 1 : vector<64x128xf32>, i32 -> vector<64x128xf32>
    %c7_i32 = arith.constant 7 : i32
    %88 = vector.broadcast %c7_i32 : i32 to vector<64x128xi32>
    %89 = arith.cmpi eq, %16, %88 : vector<64x128xi32>
    %cst_29 = arith.constant 5.000000e-01 : f32
    %90 = vector.broadcast %cst_29 : f32 to vector<64x128xf32>
    %91 = arith.cmpf ogt, %87, %90 : vector<64x128xf32>
    %cst_30 = arith.constant 0.000000e+00 : f32
    %92 = vector.broadcast %cst_30 : f32 to vector<64x128xf32>
    %93 = arith.select %91, %92, %87 : vector<64x128xi1>, vector<64x128xf32>
    %cst_31 = arith.constant 2.000000e-01 : f32
    %94 = vector.broadcast %cst_31 : f32 to vector<64x128xf32>
    %95 = arith.mulf %94, %93 : vector<64x128xf32>
    %96 = arith.addf %20, %95 : vector<64x128xf32>
    %97 = arith.select %89, %96, %86 : vector<64x128xi1>, vector<64x128xf32>
    %cst_32 = arith.constant 5.000000e-01 : f32
    %98 = vector.broadcast %cst_32 : f32 to vector<64x128xf32>
    %99 = arith.cmpf ogt, %97, %98 : vector<64x128xf32>
    %100 = arith.extui %99 : vector<64x128xi1> to vector<64x128xi32>
    %101 = arith.sitofp %100 : vector<64x128xi32> to vector<64x128xf32>
    %102 = arith.index_cast %18 : i32 to index
    %c0_33 = arith.constant 0 : index
    %103 = vector.load %arg2[%102, %c0_33] : memref<64x128xf32, #tpu.memory_space<vmem>>, vector<64x128xf32>
    tpu.vector_store %arg2[%102, %c0_33], %101 {strides = array<i32>} : memref<64x128xf32, #tpu.memory_space<vmem>>, vector<64x128xf32>,
    %c1_i32_34 = arith.constant 1 : i32
    return
  }
  func.func @transform_0(%arg0: i32) -> (i32, i32) {
    %c0_i32 = arith.constant 0 : i32
    %c0_i32_0 = arith.constant 0 : i32
    return %arg0, %c0_i32 : i32, i32
  }
  func.func @transform_1(%arg0: i32) -> (i32, i32) {
    %c0_i32 = arith.constant 0 : i32
    %c0_i32_0 = arith.constant 0 : i32
    return %arg0, %c0_i32 : i32, i32
  }
}

</mosaic_0001>

<llo_original>
// kernel: lif_forward.1
$region0: #{lif_forward.1}
  #allocation0 [shape = 'u32[]', space=smem, size = 0x4, offset = 0x4, fixed_abs, tag = 'smem constant byte address 0x4 - core index']
  #allocation1 [shape = 'u32[72,128]{1,0:T(1,128)}', space=vmem, size = 0x9000, scoped, tag = 'internal scratch']
  %s0 = inlined_call_operand.vmem [shape: f32[128,128], index: 0, kind: input, shape index: {}]
  %s1 = inlined_call_operand.vmem [shape: f32[128,128], index: 1, kind: output, shape index: {}]
  %s2 = sld [smem:[#allocation0]]
  $region37: #{lif_forward.1} parent=0
    _
  %s4 = ssub.s32 1, %s2
  %s5 = scalar_select 0, %s4, %s2
  loop: start=0, step=1, limit=4
  $region2: #{lif_forward.1} parent=0 // loop_pre_header
    _
  $region3: #{lif_forward.1} parent=0 // loop_header
    %s7 = sphi 0, %s11
    %p8 = scmp.ge.s32.totalorder %s7, 4
    %s17 = sphi 0, %s19
    %s20 = sphi 0, %s17
    %s21 = sphi 0, %s20
    %s37 = sphi 0, %s21
    %s43 = sphi 0, %s45
    %s46 = sphi 0, %s43
    %s47 = sphi 0, %s46
    %s63 = sphi 0, %s47
  $region4: #{lif_forward.1} parent=0 // loop_header_branch
    %10 = sbr.rel (%p8) target = $region8
  $region5: #{lif_forward.1} parent=0 // loop_body
    %s12 = ssub.s32 %s7, 1
    %s13 = ssub.s32 %s7, 2
    %s14 = sadd.s32 %s7, 1
    %s15 = ssub.s32 %s7, %s14
    %p16 = scmp.eq.s32.totalorder %s15, 0
    %s18 = sadd.s32 %s17, 1
    %s19 = scalar_select %p16, %s17, %s18
    %p22 = pneg %p16
    %p23 = scmp.eq.s32.totalorder %s7, 1
    %p24 = por %p22, %p23
    %p25 = scmp.ne.s32.totalorder %s17, %s20
    %p26 = scmp.eq.s32.totalorder %s7, 0
    %p27 = por %p25, %p26
    %p28 = scmp.ne.s32.totalorder %s17, %s20
    %p29 = scmp.eq.s32.totalorder %s12, 1
    %p30 = por %p28, %p29
    %p31 = scmp.ne.s32.totalorder %s20, %s21
    %p32 = scmp.eq.s32.totalorder %s12, 0
    %p33 = por %p31, %p32
    %p34 = scmp.ne.s32.totalorder %s20, %s21
    %p35 = scmp.eq.s32.totalorder %s13, 1
    %p36 = por %p34, %p35
    %p38 = scmp.ne.s32.totalorder %s21, %s37
    %p39 = scmp.eq.s32.totalorder %s13, 0
    %p40 = por %p38, %p39
    %s41 = ssub.s32 %s7, %s14
    %p42 = scmp.eq.s32.totalorder %s41, 0
    %s44 = sadd.s32 %s43, 1
    %s45 = scalar_select %p42, %s43, %s44
    %p48 = pneg %p42
    %p49 = scmp.eq.s32.totalorder %s7, 1
    %p50 = por %p48, %p49
    %p51 = scmp.ne.s32.totalorder %s43, %s46
    %p52 = scmp.eq.s32.totalorder %s7, 0
    %p53 = por %p51, %p52
    %p54 = scmp.ne.s32.totalorder %s43, %s46
    %p55 = scmp.eq.s32.totalorder %s12, 1
    %p56 = por %p54, %p55
    %p57 = scmp.ne.s32.totalorder %s46, %s47
    %p58 = scmp.eq.s32.totalorder %s12, 0
    %p59 = por %p57, %p58
    %p60 = scmp.ne.s32.totalorder %s46, %s47
    %p61 = scmp.eq.s32.totalorder %s13, 1
    %p62 = por %p60, %p61
    %p64 = scmp.ne.s32.totalorder %s47, %s63
    %p65 = scmp.eq.s32.totalorder %s13, 0
    %p66 = por %p64, %p65
    %p67 = scmp.le.s32.totalorder 1, %s7
    %p68 = scmp.lt.s32.totalorder %s7, 3
    %p69 = pnand %p67, %p68
    %p70 = pneg %p69
    // Predicated region
    $region9: #{lif_forward.1} parent=5 // pred_check
      _
    $region10: #{lif_forward.1} parent=5 // pred_check_branch
      %72 = sbr.rel (%p69) target = $region12
    $region11: #{lif_forward.1} parent=5 // pred_region
      %s73 = ssub.s32 %s7, 1
    $region12: #{lif_forward.1} parent=5 // pred_fallthru
      _
    %p74 = scmp.lt.s32.totalorder %s7, 2
    // Predicated region
    $region13: #{lif_forward.1} parent=5 // pred_check
      %p75 = pneg %p74
    $region14: #{lif_forward.1} parent=5 // pred_check_branch
      %77 = sbr.rel (%p75) target = $region16
    $region15: #{lif_forward.1} parent=5 // pred_region
      // Predicated region
      $region17: #{lif_forward.1} parent=15 // pred_check
        %p78 = pneg %p27
      $region18: #{lif_forward.1} parent=15 // pred_check_branch
        %80 = sbr.rel (%p78) target = $region20
      $region19: #{lif_forward.1} parent=15 // pred_region
        %s81 = smul.u32 8, %s7
        %p82 = scmp.lt.s32.totalorder %s81, 15
        %s83 = scalar_select %p82, %s81, 15
        %s84 = smul.addr %s83, 8
        %s85 = scalar_lea.vmem %s0, %s84
        %s86 = smul.u32 8, %s7
      $region20: #{lif_forward.1} parent=15 // pred_fallthru
        _
    $region16: #{lif_forward.1} parent=5 // pred_fallthru
      _
    %p87 = scmp.le.s32.totalorder 1, %s7
    %p88 = scmp.lt.s32.totalorder %s7, 3
    %p89 = pnand %p87, %p88
    %p90 = pneg %p89
    // Predicated region
    $region21: #{lif_forward.1} parent=5 // pred_check
      _
    $region22: #{lif_forward.1} parent=5 // pred_check_branch
      %92 = sbr.rel (%p89) target = $region24
    $region23: #{lif_forward.1} parent=5 // pred_region
      %s93 = ssub.s32 %s7, 1
      %s94 = smul.u32 8, %s12
      %p95 = scmp.lt.s32.totalorder %s94, 15
      %s96 = scalar_select %p95, %s94, 15
      %s97 = smul.addr %s96, 8
      %s98 = scalar_lea.vmem %s0, %s97
      %p99 = pneg %p33
      %p100 = pneg %p30
      %p101 = pneg %p59
      %p102 = pneg %p56
      %s103 = smul.u32 8, %s12
      %p104 = scmp.lt.s32.totalorder %s103, 15
      %s105 = scalar_select %p104, %s103, 15
      %s106 = smul.addr %s105, 8
      %s107 = scalar_lea.vmem %s1, %s106
      %s108 = smul.u32 8, %s12
      %p109 = scmp.lt.s32.totalorder %s108, 15
      %s110 = scalar_select %p109, %s108, 15
      %s111 = smul.addr %s110, 8
      %s112 = scalar_lea.vmem %s0, %s111
      %s113 = smul.u32 8, %s12
      %s114 = smul.u32 8, %s12
      %p115 = scmp.lt.s32.totalorder %s114, 15
      %s116 = scalar_select %p115, %s114, 15
      %s117 = smul.addr %s116, 8
      %s118 = scalar_lea.vmem %s1, %s117
      %s119 = smul.u32 8, %s12
      %v120 = vlaneseq
      %v121 = vand.u32 %v120, 127
      %vm122 = vcmp.lt.s32.totalorder %v121, 0
      %v123 = vsub.s32 0, %v121
      %v124 = vsel %vm122, %v123, %v121
      %v125 = vshrl.u32 %v124, 3
      %v126 = vand.u32 %v124, 7
      %v127 = vsub.s32 0, %v126
      %v128 = vsel %vm122, %v127, %v126
      %vm129 = vcmp.ne.s32.totalorder %v128, 0
      %vm130 = vcmp.lt.s32.totalorder %v128, 0
      %vm131 = vmand %vm130, %vm129
      %v132 = vadd.s32 %v128, 8
      %v133 = vsel %vm131, %v132, %v128
      %v134 = vld [vmem:[%s112] sm:$0xff]
      %v135 = vld [vmem:[%s112 + $0x8] sm:$0xff]
      %v136 = vld [vmem:[%s112 + $0x10] sm:$0xff]
      %v137 = vld [vmem:[%s112 + $0x18] sm:$0xff]
      %v138 = vld [vmem:[%s112 + $0x20] sm:$0xff]
      %v139 = vld [vmem:[%s112 + $0x28] sm:$0xff]
      %v140 = vld [vmem:[%s112 + $0x30] sm:$0xff]
      %v141 = vld [vmem:[%s112 + $0x38] sm:$0xff]
      %142 = vrot.lane.b32.xlu0 %v134, 1
      %v143 = vpop.permute.xlu0 %142
      %144 = vrot.lane.b32.xlu0 %v135, 1
      %v145 = vpop.permute.xlu0 %144
      %146 = vrot.lane.b32.xlu0 %v136, 1
      %v147 = vpop.permute.xlu0 %146
      %148 = vrot.lane.b32.xlu0 %v137, 1
      %v149 = vpop.permute.xlu0 %148
      %150 = vrot.lane.b32.xlu0 %v138, 1
      %v151 = vpop.permute.xlu0 %150
      %152 = vrot.lane.b32.xlu0 %v139, 1
      %v153 = vpop.permute.xlu0 %152
      %154 = vrot.lane.b32.xlu0 %v140, 1
      %v155 = vpop.permute.xlu0 %154
      %156 = vrot.lane.b32.xlu0 %v141, 1
      %v157 = vpop.permute.xlu0 %156
      %vm158 = vcmp.eq.s32.totalorder %v133, 1
      %vm159 = vcmp.gt.f32.partialorder %v143, 0.5
      %vm160 = vcmp.gt.f32.partialorder %v145, 0.5
      %vm161 = vcmp.gt.f32.partialorder %v147, 0.5
      %vm162 = vcmp.gt.f32.partialorder %v149, 0.5
      %vm163 = vcmp.gt.f32.partialorder %v151, 0.5
      %vm164 = vcmp.gt.f32.partialorder %v153, 0.5
      %vm165 = vcmp.gt.f32.partialorder %v155, 0.5
      %vm166 = vcmp.gt.f32.partialorder %v157, 0.5
      %v167 = vsel %vm159, 0.0, %v143
      %v168 = vsel %vm160, 0.0, %v145
      %v169 = vsel %vm161, 0.0, %v147
      %v170 = vsel %vm162, 0.0, %v149
      %v171 = vsel %vm163, 0.0, %v151
      %v172 = vsel %vm164, 0.0, %v153
      %v173 = vsel %vm165, 0.0, %v155
      %v174 = vsel %vm166, 0.0, %v157
      %v175 = vmul.f32 %v167, 0.2
      %v176 = vmul.f32 %v168, 0.2
      %v177 = vmul.f32 %v169, 0.2
      %v178 = vmul.f32 %v170, 0.2
      %v179 = vmul.f32 %v171, 0.2
      %v180 = vmul.f32 %v172, 0.2
      %v181 = vmul.f32 %v173, 0.2
      %v182 = vmul.f32 %v174, 0.2
      %v183 = vadd.f32 %v134, %v175
      %v184 = vadd.f32 %v135, %v176
      %v185 = vadd.f32 %v136, %v177
      %v186 = vadd.f32 %v137, %v178
      %v187 = vadd.f32 %v138, %v179
      %v188 = vadd.f32 %v139, %v180
      %v189 = vadd.f32 %v140, %v181
      %v190 = vadd.f32 %v141, %v182
      %v191 = vsel %vm158, %v183, %v134
      %v192 = vsel %vm158, %v184, %v135
      %v193 = vsel %vm158, %v185, %v136
      %v194 = vsel %vm158, %v186, %v137
      %v195 = vsel %vm158, %v187, %v138
      %v196 = vsel %vm158, %v188, %v139
      %v197 = vsel %vm158, %v189, %v140
      %v198 = vsel %vm158, %v190, %v141
      %199 = vrot.lane.b32.xlu0 %v191, 1
      %v200 = vpop.permute.xlu0 %199
      %201 = vrot.lane.b32.xlu0 %v192, 1
      %v202 = vpop.permute.xlu0 %201
      %203 = vrot.lane.b32.xlu0 %v193, 1
      %v204 = vpop.permute.xlu0 %203
      %205 = vrot.lane.b32.xlu0 %v194, 1
      %v206 = vpop.permute.xlu0 %205
      %207 = vrot.lane.b32.xlu0 %v195, 1
      %v208 = vpop.permute.xlu0 %207
      %209 = vrot.lane.b32.xlu0 %v196, 1
      %v210 = vpop.permute.xlu0 %209
      %211 = vrot.lane.b32.xlu0 %v197, 1
      %v212 = vpop.permute.xlu0 %211
      %213 = vrot.lane.b32.xlu0 %v198, 1
      %v214 = vpop.permute.xlu0 %213
      %vm215 = vcmp.eq.s32.totalorder %v133, 2
      %vm216 = vcmp.gt.f32.partialorder %v200, 0.5
      %vm217 = vcmp.gt.f32.partialorder %v202, 0.5
      %vm218 = vcmp.gt.f32.partialorder %v204, 0.5
      %vm219 = vcmp.gt.f32.partialorder %v206, 0.5
      %vm220 = vcmp.gt.f32.partialorder %v208, 0.5
      %vm221 = vcmp.gt.f32.partialorder %v210, 0.5
      %vm222 = vcmp.gt.f32.partialorder %v212, 0.5
      %vm223 = vcmp.gt.f32.partialorder %v214, 0.5
      %v224 = vsel %vm216, 0.0, %v200
      %v225 = vsel %vm217, 0.0, %v202
      %v226 = vsel %vm218, 0.0, %v204
      %v227 = vsel %vm219, 0.0, %v206
      %v228 = vsel %vm220, 0.0, %v208
      %v229 = vsel %vm221, 0.0, %v210
      %v230 = vsel %vm222, 0.0, %v212
      %v231 = vsel %vm223, 0.0, %v214
      %v232 = vmul.f32 %v224, 0.2
      %v233 = vmul.f32 %v225, 0.2
      %v234 = vmul.f32 %v226, 0.2
      %v235 = vmul.f32 %v227, 0.2
      %v236 = vmul.f32 %v228, 0.2
      %v237 = vmul.f32 %v229, 0.2
      %v238 = vmul.f32 %v230, 0.2
      %v239 = vmul.f32 %v231, 0.2
      %v240 = vadd.f32 %v134, %v232
      %v241 = vadd.f32 %v135, %v233
      %v242 = vadd.f32 %v136, %v234
      %v243 = vadd.f32 %v137, %v235
      %v244 = vadd.f32 %v138, %v236
      %v245 = vadd.f32 %v139, %v237
      %v246 = vadd.f32 %v140, %v238
      %v247 = vadd.f32 %v141, %v239
      %v248 = vsel %vm215, %v240, %v191
      %v249 = vsel %vm215, %v241, %v192
      %v250 = vsel %vm215, %v242, %v193
      %v251 = vsel %vm215, %v243, %v194
      %v252 = vsel %vm215, %v244, %v195
      %v253 = vsel %vm215, %v245, %v196
      %v254 = vsel %vm215, %v246, %v197
      %v255 = vsel %vm215, %v247, %v198
      %256 = vrot.lane.b32.xlu0 %v248, 1
      %v257 = vpop.permute.xlu0 %256
      %258 = vrot.lane.b32.xlu0 %v249, 1
      %v259 = vpop.permute.xlu0 %258
      %260 = vrot.lane.b32.xlu0 %v250, 1
      %v261 = vpop.permute.xlu0 %260
      %262 = vrot.lane.b32.xlu0 %v251, 1
      %v263 = vpop.permute.xlu0 %262
      %264 = vrot.lane.b32.xlu0 %v252, 1
      %v265 = vpop.permute.xlu0 %264
      %266 = vrot.lane.b32.xlu0 %v253, 1
      %v267 = vpop.permute.xlu0 %266
      %268 = vrot.lane.b32.xlu0 %v254, 1
      %v269 = vpop.permute.xlu0 %268
      %270 = vrot.lane.b32.xlu0 %v255, 1
      %v271 = vpop.permute.xlu0 %270
      %vm272 = vcmp.eq.s32.totalorder %v133, 3
      %vm273 = vcmp.gt.f32.partialorder %v257, 0.5
      %vm274 = vcmp.gt.f32.partialorder %v259, 0.5
      %vm275 = vcmp.gt.f32.partialorder %v261, 0.5
      %vm276 = vcmp.gt.f32.partialorder %v263, 0.5
      %vm277 = vcmp.gt.f32.partialorder %v265, 0.5
      %vm278 = vcmp.gt.f32.partialorder %v267, 0.5
      %vm279 = vcmp.gt.f32.partialorder %v269, 0.5
      %vm280 = vcmp.gt.f32.partialorder %v271, 0.5
      %v281 = vsel %vm273, 0.0, %v257
      %v282 = vsel %vm274, 0.0, %v259
      %v283 = vsel %vm275, 0.0, %v261
      %v284 = vsel %vm276, 0.0, %v263
      %v285 = vsel %vm277, 0.0, %v265
      %v286 = vsel %vm278, 0.0, %v267
      %v287 = vsel %vm279, 0.0, %v269
      %v288 = vsel %vm280, 0.0, %v271
      %v289 = vmul.f32 %v281, 0.2
      %v290 = vmul.f32 %v282, 0.2
      %v291 = vmul.f32 %v283, 0.2
      %v292 = vmul.f32 %v284, 0.2
      %v293 = vmul.f32 %v285, 0.2
      %v294 = vmul.f32 %v286, 0.2
      %v295 = vmul.f32 %v287, 0.2
      %v296 = vmul.f32 %v288, 0.2
      %v297 = vadd.f32 %v134, %v289
      %v298 = vadd.f32 %v135, %v290
      %v299 = vadd.f32 %v136, %v291
      %v300 = vadd.f32 %v137, %v292
      %v301 = vadd.f32 %v138, %v293
      %v302 = vadd.f32 %v139, %v294
      %v303 = vadd.f32 %v140, %v295
      %v304 = vadd.f32 %v141, %v296
      %v305 = vsel %vm272, %v297, %v248
      %v306 = vsel %vm272, %v298, %v249
      %v307 = vsel %vm272, %v299, %v250
      %v308 = vsel %vm272, %v300, %v251
      %v309 = vsel %vm272, %v301, %v252
      %v310 = vsel %vm272, %v302, %v253
      %v311 = vsel %vm272, %v303, %v254
      %v312 = vsel %vm272, %v304, %v255
      %313 = vrot.lane.b32.xlu0 %v305, 1
      %v314 = vpop.permute.xlu0 %313
      %315 = vrot.lane.b32.xlu0 %v306, 1
      %v316 = vpop.permute.xlu0 %315
      %317 = vrot.lane.b32.xlu0 %v307, 1
      %v318 = vpop.permute.xlu0 %317
      %319 = vrot.lane.b32.xlu0 %v308, 1
      %v320 = vpop.permute.xlu0 %319
      %321 = vrot.lane.b32.xlu0 %v309, 1
      %v322 = vpop.permute.xlu0 %321
      %323 = vrot.lane.b32.xlu0 %v310, 1
      %v324 = vpop.permute.xlu0 %323
      %325 = vrot.lane.b32.xlu0 %v311, 1
      %v326 = vpop.permute.xlu0 %325
      %327 = vrot.lane.b32.xlu0 %v312, 1
      %v328 = vpop.permute.xlu0 %327
      %vm329 = vcmp.eq.s32.totalorder %v133, 4
      %vm330 = vcmp.gt.f32.partialorder %v314, 0.5
      %vm331 = vcmp.gt.f32.partialorder %v316, 0.5
      %vm332 = vcmp.gt.f32.partialorder %v318, 0.5
      %vm333 = vcmp.gt.f32.partialorder %v320, 0.5
      %vm334 = vcmp.gt.f32.partialorder %v322, 0.5
      %vm335 = vcmp.gt.f32.partialorder %v324, 0.5
      %vm336 = vcmp.gt.f32.partialorder %v326, 0.5
      %vm337 = vcmp.gt.f32.partialorder %v328, 0.5
      %v338 = vsel %vm330, 0.0, %v314
      %v339 = vsel %vm331, 0.0, %v316
      %v340 = vsel %vm332, 0.0, %v318
      %v341 = vsel %vm333, 0.0, %v320
      %v342 = vsel %vm334, 0.0, %v322
      %v343 = vsel %vm335, 0.0, %v324
      %v344 = vsel %vm336, 0.0, %v326
      %v345 = vsel %vm337, 0.0, %v328
      %v346 = vmul.f32 %v338, 0.2
      %v347 = vmul.f32 %v339, 0.2
      %v348 = vmul.f32 %v340, 0.2
      %v349 = vmul.f32 %v341, 0.2
      %v350 = vmul.f32 %v342, 0.2
      %v351 = vmul.f32 %v343, 0.2
      %v352 = vmul.f32 %v344, 0.2
      %v353 = vmul.f32 %v345, 0.2
      %v354 = vadd.f32 %v134, %v346
      %v355 = vadd.f32 %v135, %v347
      %v356 = vadd.f32 %v136, %v348
      %v357 = vadd.f32 %v137, %v349
      %v358 = vadd.f32 %v138, %v350
      %v359 = vadd.f32 %v139, %v351
      %v360 = vadd.f32 %v140, %v352
      %v361 = vadd.f32 %v141, %v353
      %v362 = vsel %vm329, %v354, %v305
      %v363 = vsel %vm329, %v355, %v306
      %v364 = vsel %vm329, %v356, %v307
      %v365 = vsel %vm329, %v357, %v308
      %v366 = vsel %vm329, %v358, %v309
      %v367 = vsel %vm329, %v359, %v310
      %v368 = vsel %vm329, %v360, %v311
      %v369 = vsel %vm329, %v361, %v312
      %370 = vrot.lane.b32.xlu0 %v362, 1
      %v371 = vpop.permute.xlu0 %370
      %372 = vrot.lane.b32.xlu0 %v363, 1
      %v373 = vpop.permute.xlu0 %372
      %374 = vrot.lane.b32.xlu0 %v364, 1
      %v375 = vpop.permute.xlu0 %374
      %376 = vrot.lane.b32.xlu0 %v365, 1
      %v377 = vpop.permute.xlu0 %376
      %378 = vrot.lane.b32.xlu0 %v366, 1
      %v379 = vpop.permute.xlu0 %378
      %380 = vrot.lane.b32.xlu0 %v367, 1
      %v381 = vpop.permute.xlu0 %380
      %382 = vrot.lane.b32.xlu0 %v368, 1
      %v383 = vpop.permute.xlu0 %382
      %384 = vrot.lane.b32.xlu0 %v369, 1
      %v385 = vpop.permute.xlu0 %384
      %vm386 = vcmp.eq.s32.totalorder %v133, 5
      %vm387 = vcmp.gt.f32.partialorder %v371, 0.5
      %vm388 = vcmp.gt.f32.partialorder %v373, 0.5
      %vm389 = vcmp.gt.f32.partialorder %v375, 0.5
      %vm390 = vcmp.gt.f32.partialorder %v377, 0.5
      %vm391 = vcmp.gt.f32.partialorder %v379, 0.5
      %vm392 = vcmp.gt.f32.partialorder %v381, 0.5
      %vm393 = vcmp.gt.f32.partialorder %v383, 0.5
      %vm394 = vcmp.gt.f32.partialorder %v385, 0.5
      %v395 = vsel %vm387, 0.0, %v371
      %v396 = vsel %vm388, 0.0, %v373
      %v397 = vsel %vm389, 0.0, %v375
      %v398 = vsel %vm390, 0.0, %v377
      %v399 = vsel %vm391, 0.0, %v379
      %v400 = vsel %vm392, 0.0, %v381
      %v401 = vsel %vm393, 0.0, %v383
      %v402 = vsel %vm394, 0.0, %v385
      %v403 = vmul.f32 %v395, 0.2
      %v404 = vmul.f32 %v396, 0.2
      %v405 = vmul.f32 %v397, 0.2
      %v406 = vmul.f32 %v398, 0.2
      %v407 = vmul.f32 %v399, 0.2
      %v408 = vmul.f32 %v400, 0.2
      %v409 = vmul.f32 %v401, 0.2
      %v410 = vmul.f32 %v402, 0.2
      %v411 = vadd.f32 %v134, %v403
      %v412 = vadd.f32 %v135, %v404
      %v413 = vadd.f32 %v136, %v405
      %v414 = vadd.f32 %v137, %v406
      %v415 = vadd.f32 %v138, %v407
      %v416 = vadd.f32 %v139, %v408
      %v417 = vadd.f32 %v140, %v409
      %v418 = vadd.f32 %v141, %v410
      %v419 = vsel %vm386, %v411, %v362
      %v420 = vsel %vm386, %v412, %v363
      %v421 = vsel %vm386, %v413, %v364
      %v422 = vsel %vm386, %v414, %v365
      %v423 = vsel %vm386, %v415, %v366
      %v424 = vsel %vm386, %v416, %v367
      %v425 = vsel %vm386, %v417, %v368
      %v426 = vsel %vm386, %v418, %v369
      %427 = vrot.lane.b32.xlu0 %v419, 1
      %v428 = vpop.permute.xlu0 %427
      %429 = vrot.lane.b32.xlu0 %v420, 1
      %v430 = vpop.permute.xlu0 %429
      %431 = vrot.lane.b32.xlu0 %v421, 1
      %v432 = vpop.permute.xlu0 %431
      %433 = vrot.lane.b32.xlu0 %v422, 1
      %v434 = vpop.permute.xlu0 %433
      %435 = vrot.lane.b32.xlu0 %v423, 1
      %v436 = vpop.permute.xlu0 %435
      %437 = vrot.lane.b32.xlu0 %v424, 1
      %v438 = vpop.permute.xlu0 %437
      %439 = vrot.lane.b32.xlu0 %v425, 1
      %v440 = vpop.permute.xlu0 %439
      %441 = vrot.lane.b32.xlu0 %v426, 1
      %v442 = vpop.permute.xlu0 %441
      %vm443 = vcmp.eq.s32.totalorder %v133, 6
      %vm444 = vcmp.gt.f32.partialorder %v428, 0.5
      %vm445 = vcmp.gt.f32.partialorder %v430, 0.5
      %vm446 = vcmp.gt.f32.partialorder %v432, 0.5
      %vm447 = vcmp.gt.f32.partialorder %v434, 0.5
      %vm448 = vcmp.gt.f32.partialorder %v436, 0.5
      %vm449 = vcmp.gt.f32.partialorder %v438, 0.5
      %vm450 = vcmp.gt.f32.partialorder %v440, 0.5
      %vm451 = vcmp.gt.f32.partialorder %v442, 0.5
      %v452 = vsel %vm444, 0.0, %v428
      %v453 = vsel %vm445, 0.0, %v430
      %v454 = vsel %vm446, 0.0, %v432
      %v455 = vsel %vm447, 0.0, %v434
      %v456 = vsel %vm448, 0.0, %v436
      %v457 = vsel %vm449, 0.0, %v438
      %v458 = vsel %vm450, 0.0, %v440
      %v459 = vsel %vm451, 0.0, %v442
      %v460 = vmul.f32 %v452, 0.2
      %v461 = vmul.f32 %v453, 0.2
      %v462 = vmul.f32 %v454, 0.2
      %v463 = vmul.f32 %v455, 0.2
      %v464 = vmul.f32 %v456, 0.2
      %v465 = vmul.f32 %v457, 0.2
      %v466 = vmul.f32 %v458, 0.2
      %v467 = vmul.f32 %v459, 0.2
      %v468 = vadd.f32 %v134, %v460
      %v469 = vadd.f32 %v135, %v461
      %v470 = vadd.f32 %v136, %v462
      %v471 = vadd.f32 %v137, %v463
      %v472 = vadd.f32 %v138, %v464
      %v473 = vadd.f32 %v139, %v465
      %v474 = vadd.f32 %v140, %v466
      %v475 = vadd.f32 %v141, %v467
      %v476 = vsel %vm443, %v468, %v419
      %v477 = vsel %vm443, %v469, %v420
      %v478 = vsel %vm443, %v470, %v421
      %v479 = vsel %vm443, %v471, %v422
      %v480 = vsel %vm443, %v472, %v423
      %v481 = vsel %vm443, %v473, %v424
      %v482 = vsel %vm443, %v474, %v425
      %v483 = vsel %vm443, %v475, %v426
      %484 = vrot.lane.b32.xlu0 %v476, 1
      %v485 = vpop.permute.xlu0 %484
      %486 = vrot.lane.b32.xlu0 %v477, 1
      %v487 = vpop.permute.xlu0 %486
      %488 = vrot.lane.b32.xlu0 %v478, 1
      %v489 = vpop.permute.xlu0 %488
      %490 = vrot.lane.b32.xlu0 %v479, 1
      %v491 = vpop.permute.xlu0 %490
      %492 = vrot.lane.b32.xlu0 %v480, 1
      %v493 = vpop.permute.xlu0 %492
      %494 = vrot.lane.b32.xlu0 %v481, 1
      %v495 = vpop.permute.xlu0 %494
      %496 = vrot.lane.b32.xlu0 %v482, 1
      %v497 = vpop.permute.xlu0 %496
      %498 = vrot.lane.b32.xlu0 %v483, 1
      %v499 = vpop.permute.xlu0 %498
      %vm500 = vcmp.eq.s32.totalorder %v133, 7
      %vm501 = vcmp.gt.f32.partialorder %v485, 0.5
      %vm502 = vcmp.gt.f32.partialorder %v487, 0.5
      %vm503 = vcmp.gt.f32.partialorder %v489, 0.5
      %vm504 = vcmp.gt.f32.partialorder %v491, 0.5
      %vm505 = vcmp.gt.f32.partialorder %v493, 0.5
      %vm506 = vcmp.gt.f32.partialorder %v495, 0.5
      %vm507 = vcmp.gt.f32.partialorder %v497, 0.5
      %vm508 = vcmp.gt.f32.partialorder %v499, 0.5
      %v509 = vsel %vm501, 0.0, %v485
      %v510 = vsel %vm502, 0.0, %v487
      %v511 = vsel %vm503, 0.0, %v489
      %v512 = vsel %vm504, 0.0, %v491
      %v513 = vsel %vm505, 0.0, %v493
      %v514 = vsel %vm506, 0.0, %v495
      %v515 = vsel %vm507, 0.0, %v497
      %v516 = vsel %vm508, 0.0, %v499
      %v517 = vmul.f32 %v509, 0.2
      %v518 = vmul.f32 %v510, 0.2
      %v519 = vmul.f32 %v511, 0.2
      %v520 = vmul.f32 %v512, 0.2
      %v521 = vmul.f32 %v513, 0.2
      %v522 = vmul.f32 %v514, 0.2
      %v523 = vmul.f32 %v515, 0.2
      %v524 = vmul.f32 %v516, 0.2
      %v525 = vadd.f32 %v134, %v517
      %v526 = vadd.f32 %v135, %v518
      %v527 = vadd.f32 %v136, %v519
      %v528 = vadd.f32 %v137, %v520
      %v529 = vadd.f32 %v138, %v521
      %v530 = vadd.f32 %v139, %v522
      %v531 = vadd.f32 %v140, %v523
      %v532 = vadd.f32 %v141, %v524
      %v533 = vsel %vm500, %v525, %v476
      %v534 = vsel %vm500, %v526, %v477
      %v535 = vsel %vm500, %v527, %v478
      %v536 = vsel %vm500, %v528, %v479
      %v537 = vsel %vm500, %v529, %v480
      %v538 = vsel %vm500, %v530, %v481
      %v539 = vsel %vm500, %v531, %v482
      %v540 = vsel %vm500, %v532, %v483
      %vm541 = vcmp.gt.f32.partialorder %v533, 0.5
      %vm542 = vcmp.gt.f32.partialorder %v534, 0.5
      %vm543 = vcmp.gt.f32.partialorder %v535, 0.5
      %vm544 = vcmp.gt.f32.partialorder %v536, 0.5
      %vm545 = vcmp.gt.f32.partialorder %v537, 0.5
      %vm546 = vcmp.gt.f32.partialorder %v538, 0.5
      %vm547 = vcmp.gt.f32.partialorder %v539, 0.5
      %vm548 = vcmp.gt.f32.partialorder %v540, 0.5
      %v549 = vsel %vm541, 1, 0
      %v550 = vsel %vm542, 1, 0
      %v551 = vsel %vm543, 1, 0
      %v552 = vsel %vm544, 1, 0
      %v553 = vsel %vm545, 1, 0
      %v554 = vsel %vm546, 1, 0
      %v555 = vsel %vm547, 1, 0
      %v556 = vsel %vm548, 1, 0
      %v557 = vcvt.s32.f32 %v549
      %v558 = vcvt.s32.f32 %v550
      %v559 = vcvt.s32.f32 %v551
      %v560 = vcvt.s32.f32 %v552
      %v561 = vcvt.s32.f32 %v553
      %v562 = vcvt.s32.f32 %v554
      %v563 = vcvt.s32.f32 %v555
      %v564 = vcvt.s32.f32 %v556
      %565 = vst [vmem:[%s118] sm:$0xff] %v557
      %566 = vst [vmem:[%s118 + $0x8] sm:$0xff] %v558
      %567 = vst [vmem:[%s118 + $0x10] sm:$0xff] %v559
      %568 = vst [vmem:[%s118 + $0x18] sm:$0xff] %v560
      %569 = vst [vmem:[%s118 + $0x20] sm:$0xff] %v561
      %570 = vst [vmem:[%s118 + $0x28] sm:$0xff] %v562
      %571 = vst [vmem:[%s118 + $0x30] sm:$0xff] %v563
      %572 = vst [vmem:[%s118 + $0x38] sm:$0xff] %v564
      %s573 = smul.u32 8, %s12
      %p574 = scmp.lt.s32.totalorder %s573, 15
      %s575 = scalar_select %p574, %s573, 15
      %s576 = smul.addr %s575, 8
      %s577 = scalar_lea.vmem %s1, %s576
      // Predicated region
      $region25: #{lif_forward.1} parent=23 // pred_check
        %p578 = pneg %p56
      $region26: #{lif_forward.1} parent=23 // pred_check_branch
        %580 = sbr.rel (%p578) target = $region28
      $region27: #{lif_forward.1} parent=23 // pred_region
        %s581 = smul.u32 8, %s12
      $region28: #{lif_forward.1} parent=23 // pred_fallthru
        _
    $region24: #{lif_forward.1} parent=5 // pred_fallthru
      _
    %p582 = scmp.le.s32.totalorder 2, %s7
    // Predicated region
    $region29: #{lif_forward.1} parent=5 // pred_check
      %p583 = pneg %p582
    $region30: #{lif_forward.1} parent=5 // pred_check_branch
      %585 = sbr.rel (%p583) target = $region32
    $region31: #{lif_forward.1} parent=5 // pred_region
      %s586 = ssub.s32 %s7, 2
      // Predicated region
      $region33: #{lif_forward.1} parent=31 // pred_check
        %p587 = pneg %p62
      $region34: #{lif_forward.1} parent=31 // pred_check_branch
        %589 = sbr.rel (%p587) target = $region36
      $region35: #{lif_forward.1} parent=31 // pred_region
        %s590 = smul.u32 8, %s13
        %p591 = scmp.lt.s32.totalorder %s590, 15
        %s592 = scalar_select %p591, %s590, 15
        %s593 = smul.addr %s592, 8
        %s594 = scalar_lea.vmem %s1, %s593
      $region36: #{lif_forward.1} parent=31 // pred_fallthru
        _
    $region32: #{lif_forward.1} parent=5 // pred_fallthru
      _
  $region6: #{lif_forward.1} parent=0 // loop_footer
    %s11 = sadd.s32 1, %s7
  $region7: #{lif_forward.1} parent=0 // loop_footer_branch
    %6 = sbr.rel target = $region3
  $region8: #{lif_forward.1} parent=0 // loop_exit
    _

</llo_original>
